<compile_context>
chip_gen: v5e
topology: v5e:2x2
jax: 0.10.0
libtpu: 0.0.40
codegen_flags: <defaults>
</compile_context>

<pallas_src>
import jax
import jax.numpy as jnp
from jax.experimental import pallas as pl
from jax.experimental.pallas import tpu as pltpu


def _make_kernel(H, W, Cin, Cout, flow):
    HW = H * W
    PAD = W + 1  # flat-layout halo: one full row + one column on each side

    def kernel(x_ref, w_ref, bias_ref, alpha_ref, o_ref, xe_ref, p_ref):
        # x_ref:     (1, Cin, H*W)       f32   one image, channels on sublanes, H*W on lanes
        # w_ref:     (Cout, 9*Cin)       bf16  folded depthwise*pointwise*BN-scale weights
        # bias_ref:  (Cout, 1)           f32   folded BN shift
        # alpha_ref: (Cin,1)/(Cout,1)    f32   PReLU slopes (input side for 'M', output otherwise)
        # o_ref:     (1, Cout, H*W)      f32   NCHW output (spatial flattened -> lane dense)
        # xe_ref:    (Cin, H*W + 2*PAD)  f32   scratch: zero-haloed, row-flattened image
        # p_ref:     (9*Cin, H*W)        f32   scratch: im2col patch matrix
        x = x_ref[0]                                       # (Cin, HW)

        if flow == 'M':                                    # PReLU on the input (in_channels slopes)
            a_in = alpha_ref[...]                          # (Cin, 1)
            x = jnp.where(x > 0, x, a_in * x)
        # Dropout2d is identity in eval mode -> no-op.
        # TODO(synk): training-mode Dropout2d (random channel zeroing) not implemented.

        # In-kernel halo: flat buffer with PAD zeros on each side.  A 2-D shift (dy, dx) becomes a
        # static lane-offset slice at PAD + dy*W + dx; only horizontal wrap needs a mask.
        xe_ref[...] = jnp.zeros(xe_ref.shape, xe_ref.dtype)
        xe_ref[:, PAD:PAD + HW] = x

        col = jax.lax.broadcasted_iota(jnp.int32, (1, HW), 1) % W
        ok_left = col >= 1          # valid lanes when dx == -1
        ok_right = col <= W - 2     # valid lanes when dx == +1

        # Build the (9*Cin, HW) patch matrix; row block t = (dy+1)*3 + (dx+1) holds the (dy,dx) tap.
        for dy in (-1, 0, 1):
            for dx in (-1, 0, 1):
                t = (dy + 1) * 3 + (dx + 1)
                off = PAD + dy * W + dx
                tap = xe_ref[:, off:off + HW]              # (Cin, HW)
                if dx == -1:
                    tap = jnp.where(ok_left, tap, 0.0)
                elif dx == 1:
                    tap = jnp.where(ok_right, tap, 0.0)
                p_ref[t * Cin:(t + 1) * Cin, :] = tap

        # Single MXU matmul: (Cout, 9*Cin) @ (9*Cin, HW), bf16 operands, f32 accumulation.
        y = jnp.dot(w_ref[...], p_ref[...].astype(jnp.bfloat16),
                    preferred_element_type=jnp.float32)    # (Cout, HW)
        y = y + bias_ref[...]                              # folded BN shift

        if flow != 'M':                                    # PReLU on the output (out_channels slopes)
            a_out = alpha_ref[...]                         # (Cout, 1)
            y = jnp.where(y > 0, y, a_out * y)
        # Dropout2d identity in eval mode.

        o_ref[0] = y.astype(o_ref.dtype)

    return kernel


def conv_block_forward(x, dw_w, pw_w, gamma, beta, running_mean, running_var, alpha,
                       *, flow='P', eps=1e-5):
    """Forward pass of the `conv` module (eval mode).

    x:    (N, Cin, H, W) f32, NCHW (PyTorch layout)
    dw_w: (Cin, 1, 3, 3)   depthwise Conv2d weight (groups=Cin, bias=False)
    pw_w: (Cout, Cin, 1, 1) pointwise Conv2d weight (bias=False)
    gamma, beta, running_mean, running_var: (Cout,) BatchNorm2d params (eval / running stats)
    alpha: PReLU slopes, (Cin,) if flow == 'M' else (Cout,)
    Returns (N, Cout, H, W) f32.
    """
    N, Cin, H, W = x.shape
    Cout = pw_w.shape[0]
    HW = H * W

    # Fold BN (eval) + pointwise + depthwise into one dense 3x3 conv weight + bias.
    scale = gamma / jnp.sqrt(running_var + eps)                       # (Cout,)
    shift = beta - running_mean * scale                               # (Cout,)
    dw = dw_w.reshape(Cin, 3, 3)
    pw = pw_w.reshape(Cout, Cin)
    w_eff = (scale[:, None] * pw)[:, :, None, None] * dw[None, :, :, :]   # (Cout, Cin, 3, 3)
    # column index = tap*Cin + ci with tap = ky*3 + kx (matches patch-row ordering in the kernel)
    wmat = jnp.transpose(w_eff, (0, 2, 3, 1)).reshape(Cout, 9 * Cin).astype(jnp.bfloat16)
    bias = shift.reshape(Cout, 1).astype(jnp.float32)
    alpha2 = alpha.reshape(-1, 1).astype(jnp.float32)

    x_flat = x.reshape(N, Cin, HW)        # trailing-dim collapse: free, no HBM copy

    kernel = _make_kernel(H, W, Cin, Cout, flow)
    out_flat = pl.pallas_call(
        kernel,
        out_shape=jax.ShapeDtypeStruct((N, Cout, HW), jnp.float32),
        grid_spec=pltpu.PrefetchScalarGridSpec(
            num_scalar_prefetch=0,
            grid=(N,),
            in_specs=[
                pl.BlockSpec((1, Cin, HW), lambda n: (n, 0, 0)),
                pl.BlockSpec((Cout, 9 * Cin), lambda n: (0, 0)),     # resident across steps
                pl.BlockSpec((Cout, 1), lambda n: (0, 0)),
                pl.BlockSpec((alpha2.shape[0], 1), lambda n: (0, 0)),
            ],
            out_specs=pl.BlockSpec((1, Cout, HW), lambda n: (n, 0, 0)),
            scratch_shapes=[
                pltpu.VMEM((Cin, HW + 2 * (W + 1)), jnp.float32),    # haloed flat image
                pltpu.VMEM((9 * Cin, HW), jnp.float32),              # im2col patches
            ],
        ),
        compiler_params=pltpu.CompilerParams(
            dimension_semantics=("parallel",),
        ),
    )(x_flat, wmat, bias, alpha2)

    return out_flat.reshape(N, Cout, H, W)                # free split of trailing dim


def _reference(x, dw_w, pw_w, gamma, beta, running_mean, running_var, alpha, *, flow, eps=1e-5):
    """Faithful plain-JAX (f32) implementation of the module's eval-mode forward."""
    Cin = x.shape[1]

    def prelu(v, a):
        return jnp.where(v > 0, v, a.reshape(1, -1, 1, 1) * v)

    def bn(v):
        s = (gamma / jnp.sqrt(running_var + eps)).reshape(1, -1, 1, 1)
        b = beta.reshape(1, -1, 1, 1) - running_mean.reshape(1, -1, 1, 1) * s
        return v * s + b

    def dwconv(v):
        return jax.lax.conv_general_dilated(
            v, dw_w, (1, 1), 'SAME',
            dimension_numbers=('NCHW', 'OIHW', 'NCHW'),
            feature_group_count=Cin)

    def pwconv(v):
        return jax.lax.conv_general_dilated(
            v, pw_w, (1, 1), 'VALID',
            dimension_numbers=('NCHW', 'OIHW', 'NCHW'))

    if flow == 'M':
        return bn(pwconv(dwconv(prelu(x, alpha))))        # dropout = identity (eval)
    return prelu(bn(pwconv(dwconv(x))), alpha)            # dropout = identity (eval)


if __name__ == "__main__":
    key = jax.random.PRNGKey(0)
    N, Cin, Cout, H, W = 2, 4, 8, 16, 16
    ks = jax.random.split(key, 9)

    x = jax.random.normal(ks[0], (N, Cin, H, W), jnp.float32)
    dw_w = 0.3 * jax.random.normal(ks[1], (Cin, 1, 3, 3), jnp.float32)      # depthwise weight
    pw_w = 0.3 * jax.random.normal(ks[2], (Cout, Cin, 1, 1), jnp.float32)   # pointwise weight
    gamma = 1.0 + 0.1 * jax.random.normal(ks[3], (Cout,), jnp.float32)
    beta = 0.1 * jax.random.normal(ks[4], (Cout,), jnp.float32)
    running_mean = 0.1 * jax.random.normal(ks[5], (Cout,), jnp.float32)
    running_var = 1.0 + 0.1 * jax.random.uniform(ks[6], (Cout,), jnp.float32)
    alpha_out = 0.25 + 0.05 * jax.random.normal(ks[7], (Cout,), jnp.float32)  # PReLU(out_channels)
    alpha_in = 0.25 + 0.05 * jax.random.normal(ks[8], (Cin,), jnp.float32)    # PReLU(in_channels)

    # flow != 'M':  conv -> pconv -> bn -> prelu(out) -> dropout(id)
    out_p = conv_block_forward(x, dw_w, pw_w, gamma, beta, running_mean, running_var,
                               alpha_out, flow='P')
    out_p = jax.block_until_ready(out_p)
    ref_p = _reference(x, dw_w, pw_w, gamma, beta, running_mean, running_var,
                       alpha_out, flow='P')
    assert out_p.shape == (N, Cout, H, W)
    assert jnp.allclose(out_p, ref_p, atol=2e-2, rtol=2e-2), "flow!='M' mismatch vs reference"

    # flow == 'M':  prelu(in) -> dropout(id) -> conv -> pconv -> bn
    out_m = conv_block_forward(x, dw_w, pw_w, gamma, beta, running_mean, running_var,
                               alpha_in, flow='M')
    out_m = jax.block_until_ready(out_m)
    ref_m = _reference(x, dw_w, pw_w, gamma, beta, running_mean, running_var,
                       alpha_in, flow='M')
    assert out_m.shape == (N, Cout, H, W)
    assert jnp.allclose(out_m, ref_m, atol=2e-2, rtol=2e-2), "flow=='M' mismatch vs reference"

    print("KERNEL_OK")
</pallas_src>

<mosaic_0001>
module attributes {stable_mosaic.version = 11 : i64} {
  func.func @kernel(%arg0: i32, %arg1: memref<1x4x256xf32, #tpu.memory_space<vmem>>, %arg2: memref<8x36xbf16, #tpu.memory_space<vmem>>, %arg3: memref<8x1xf32, #tpu.memory_space<vmem>>, %arg4: memref<8x1xf32, #tpu.memory_space<vmem>>, %arg5: memref<1x8x256xf32, #tpu.memory_space<vmem>>, %arg6: memref<4x290xf32, #tpu.memory_space<vmem>>, %arg7: memref<36x256xf32, #tpu.memory_space<vmem>>) attributes {dimension_semantics = [#tpu.dimension_semantics<parallel>], iteration_bounds = array<i64: 2>, scalar_prefetch = 0 : i64, scratch_operands = 2 : i64, tpu.core_type = #tpu.core_type<tc>, window_params = [{transform_indices = @transform_0, window_bounds = array<i64: 1, 4, 256>}, {pipeline_mode = #tpu.pipeline_mode<synchronous>, transform_indices = @transform_1, window_bounds = array<i64: 8, 36>}, {pipeline_mode = #tpu.pipeline_mode<synchronous>, transform_indices = @transform_2, window_bounds = array<i64: 8, 1>}, {pipeline_mode = #tpu.pipeline_mode<synchronous>, transform_indices = @transform_3, window_bounds = array<i64: 8, 1>}, {transform_indices = @transform_4, window_bounds = array<i64: 1, 8, 256>}]} {
    %c0 = arith.constant 0 : index
    %c0_0 = arith.constant 0 : index
    %c0_1 = arith.constant 0 : index
    %0 = vector.load %arg1[%c0, %c0_0, %c0_1] : memref<1x4x256xf32, #tpu.memory_space<vmem>>, vector<1x4x256xf32>
    %1 = vector.shape_cast %0 : vector<1x4x256xf32> to vector<4x256xf32>
    %cst = arith.constant 0.000000e+00 : f32
    %2 = vector.broadcast %cst : f32 to vector<4x290xf32>
    %c0_2 = arith.constant 0 : index
    %c0_3 = arith.constant 0 : index
    %3 = vector.load %arg6[%c0_2, %c0_3] : memref<4x290xf32, #tpu.memory_space<vmem>>, vector<4x290xf32>
    tpu.vector_store %arg6[%c0_2, %c0_3], %2 {strides = array<i32>} : memref<4x290xf32, #tpu.memory_space<vmem>>, vector<4x290xf32>,
    %c0_4 = arith.constant 0 : index
    %c17 = arith.constant 17 : index
    %4 = vector.load %arg6[%c0_4, %c17] : memref<4x290xf32, #tpu.memory_space<vmem>>, vector<4x256xf32>
    tpu.vector_store %arg6[%c0_4, %c17], %1 {strides = array<i32>} : memref<4x290xf32, #tpu.memory_space<vmem>>, vector<4x256xf32>,
    %5 = tpu.iota {dimensions = array<i32: 1>} : vector<1x256xi32>
    %c16_i32 = arith.constant 16 : i32
    %c0_i32 = arith.constant 0 : i32
    %6 = arith.cmpi eq, %c16_i32, %c0_i32 : i32
    %c1_i32 = arith.constant 1 : i32
    %7 = arith.select %6, %c1_i32, %c16_i32 : i32
    %8 = vector.broadcast %7 : i32 to vector<1x256xi32>
    %9 = arith.remsi %5, %8 : vector<1x256xi32>
    %c0_i32_5 = arith.constant 0 : i32
    %10 = vector.broadcast %c0_i32_5 : i32 to vector<1x256xi32>
    %11 = arith.cmpi ne, %9, %10 : vector<1x256xi32>
    %c0_i32_6 = arith.constant 0 : i32
    %12 = vector.broadcast %c0_i32_6 : i32 to vector<1x256xi32>
    %13 = arith.cmpi slt, %9, %12 : vector<1x256xi32>
    %c0_i32_7 = arith.constant 0 : i32
    %14 = arith.cmpi slt, %7, %c0_i32_7 : i32
    %15 = vector.broadcast %14 : i1 to vector<1x256xi1>
    %16 = vector.broadcast %15 : vector<1x256xi1> to vector<1x256xi1>
    %17 = arith.xori %13, %16 : vector<1x256xi1>
    %18 = arith.andi %17, %11 : vector<1x256xi1>
    %19 = vector.broadcast %7 : i32 to vector<1x256xi32>
    %20 = arith.addi %9, %19 : vector<1x256xi32>
    %21 = arith.select %18, %20, %9 : vector<1x256xi1>, vector<1x256xi32>
    %c1_i32_8 = arith.constant 1 : i32
    %22 = vector.broadcast %c1_i32_8 : i32 to vector<1x256xi32>
    %23 = arith.cmpi sge, %21, %22 : vector<1x256xi32>
    %c14_i32 = arith.constant 14 : i32
    %24 = vector.broadcast %c14_i32 : i32 to vector<1x256xi32>
    %25 = arith.cmpi sle, %21, %24 : vector<1x256xi32>
    %c0_9 = arith.constant 0 : index
    %c0_10 = arith.constant 0 : index
    %26 = vector.load %arg6[%c0_9, %c0_10] : memref<4x290xf32, #tpu.memory_space<vmem>>, vector<4x256xf32>
    %cst_11 = arith.constant 0.000000e+00 : f32
    %27 = vector.shape_cast %23 : vector<1x256xi1> to vector<1x256xi1>
    %28 = vector.broadcast %27 : vector<1x256xi1> to vector<4x256xi1>
    %29 = vector.broadcast %cst_11 : f32 to vector<4x256xf32>
    %30 = arith.select %28, %26, %29 : vector<4x256xi1>, vector<4x256xf32>
    %c0_12 = arith.constant 0 : index
    %c0_13 = arith.constant 0 : index
    %31 = vector.load %arg7[%c0_12, %c0_13] : memref<36x256xf32, #tpu.memory_space<vmem>>, vector<4x256xf32>
    tpu.vector_store %arg7[%c0_12, %c0_13], %30 {strides = array<i32>} : memref<36x256xf32, #tpu.memory_space<vmem>>, vector<4x256xf32>,
    %c0_14 = arith.constant 0 : index
    %c1 = arith.constant 1 : index
    %32 = vector.load %arg6[%c0_14, %c1] : memref<4x290xf32, #tpu.memory_space<vmem>>, vector<4x256xf32>
    %c4 = arith.constant 4 : index
    %c0_15 = arith.constant 0 : index
    %33 = vector.load %arg7[%c4, %c0_15] : memref<36x256xf32, #tpu.memory_space<vmem>>, vector<4x256xf32>
    tpu.vector_store %arg7[%c4, %c0_15], %32 {strides = array<i32>} : memref<36x256xf32, #tpu.memory_space<vmem>>, vector<4x256xf32>,
    %c0_16 = arith.constant 0 : index
    %c2 = arith.constant 2 : index
    %34 = vector.load %arg6[%c0_16, %c2] : memref<4x290xf32, #tpu.memory_space<vmem>>, vector<4x256xf32>
    %cst_17 = arith.constant 0.000000e+00 : f32
    %35 = vector.shape_cast %25 : vector<1x256xi1> to vector<1x256xi1>
    %36 = vector.broadcast %35 : vector<1x256xi1> to vector<4x256xi1>
    %37 = vector.broadcast %cst_17 : f32 to vector<4x256xf32>
    %38 = arith.select %36, %34, %37 : vector<4x256xi1>, vector<4x256xf32>
    %c8 = arith.constant 8 : index
    %c0_18 = arith.constant 0 : index
    %39 = vector.load %arg7[%c8, %c0_18] : memref<36x256xf32, #tpu.memory_space<vmem>>, vector<4x256xf32>
    tpu.vector_store %arg7[%c8, %c0_18], %38 {strides = array<i32>} : memref<36x256xf32, #tpu.memory_space<vmem>>, vector<4x256xf32>,
    %c0_19 = arith.constant 0 : index
    %c16 = arith.constant 16 : index
    %40 = vector.load %arg6[%c0_19, %c16] : memref<4x290xf32, #tpu.memory_space<vmem>>, vector<4x256xf32>
    %cst_20 = arith.constant 0.000000e+00 : f32
    %41 = vector.shape_cast %23 : vector<1x256xi1> to vector<1x256xi1>
    %42 = vector.broadcast %41 : vector<1x256xi1> to vector<4x256xi1>
    %43 = vector.broadcast %cst_20 : f32 to vector<4x256xf32>
    %44 = arith.select %42, %40, %43 : vector<4x256xi1>, vector<4x256xf32>
    %c12 = arith.constant 12 : index
    %c0_21 = arith.constant 0 : index
    %45 = vector.load %arg7[%c12, %c0_21] : memref<36x256xf32, #tpu.memory_space<vmem>>, vector<4x256xf32>
    tpu.vector_store %arg7[%c12, %c0_21], %44 {strides = array<i32>} : memref<36x256xf32, #tpu.memory_space<vmem>>, vector<4x256xf32>,
    %c0_22 = arith.constant 0 : index
    %c17_23 = arith.constant 17 : index
    %46 = vector.load %arg6[%c0_22, %c17_23] : memref<4x290xf32, #tpu.memory_space<vmem>>, vector<4x256xf32>
    %c16_24 = arith.constant 16 : index
    %c0_25 = arith.constant 0 : index
    %47 = vector.load %arg7[%c16_24, %c0_25] : memref<36x256xf32, #tpu.memory_space<vmem>>, vector<4x256xf32>
    tpu.vector_store %arg7[%c16_24, %c0_25], %46 {strides = array<i32>} : memref<36x256xf32, #tpu.memory_space<vmem>>, vector<4x256xf32>,
    %c0_26 = arith.constant 0 : index
    %c18 = arith.constant 18 : index
    %48 = vector.load %arg6[%c0_26, %c18] : memref<4x290xf32, #tpu.memory_space<vmem>>, vector<4x256xf32>
    %cst_27 = arith.constant 0.000000e+00 : f32
    %49 = vector.shape_cast %25 : vector<1x256xi1> to vector<1x256xi1>
    %50 = vector.broadcast %49 : vector<1x256xi1> to vector<4x256xi1>
    %51 = vector.broadcast %cst_27 : f32 to vector<4x256xf32>
    %52 = arith.select %50, %48, %51 : vector<4x256xi1>, vector<4x256xf32>
    %c20 = arith.constant 20 : index
    %c0_28 = arith.constant 0 : index
    %53 = vector.load %arg7[%c20, %c0_28] : memref<36x256xf32, #tpu.memory_space<vmem>>, vector<4x256xf32>
    tpu.vector_store %arg7[%c20, %c0_28], %52 {strides = array<i32>} : memref<36x256xf32, #tpu.memory_space<vmem>>, vector<4x256xf32>,
    %c0_29 = arith.constant 0 : index
    %c32 = arith.constant 32 : index
    %54 = vector.load %arg6[%c0_29, %c32] : memref<4x290xf32, #tpu.memory_space<vmem>>, vector<4x256xf32>
    %cst_30 = arith.constant 0.000000e+00 : f32
    %55 = vector.shape_cast %23 : vector<1x256xi1> to vector<1x256xi1>
    %56 = vector.broadcast %55 : vector<1x256xi1> to vector<4x256xi1>
    %57 = vector.broadcast %cst_30 : f32 to vector<4x256xf32>
    %58 = arith.select %56, %54, %57 : vector<4x256xi1>, vector<4x256xf32>
    %c24 = arith.constant 24 : index
    %c0_31 = arith.constant 0 : index
    %59 = vector.load %arg7[%c24, %c0_31] : memref<36x256xf32, #tpu.memory_space<vmem>>, vector<4x256xf32>
    tpu.vector_store %arg7[%c24, %c0_31], %58 {strides = array<i32>} : memref<36x256xf32, #tpu.memory_space<vmem>>, vector<4x256xf32>,
    %c0_32 = arith.constant 0 : index
    %c33 = arith.constant 33 : index
    %60 = vector.load %arg6[%c0_32, %c33] : memref<4x290xf32, #tpu.memory_space<vmem>>, vector<4x256xf32>
    %c28 = arith.constant 28 : index
    %c0_33 = arith.constant 0 : index
    %61 = vector.load %arg7[%c28, %c0_33] : memref<36x256xf32, #tpu.memory_space<vmem>>, vector<4x256xf32>
    tpu.vector_store %arg7[%c28, %c0_33], %60 {strides = array<i32>} : memref<36x256xf32, #tpu.memory_space<vmem>>, vector<4x256xf32>,
    %c0_34 = arith.constant 0 : index
    %c34 = arith.constant 34 : index
    %62 = vector.load %arg6[%c0_34, %c34] : memref<4x290xf32, #tpu.memory_space<vmem>>, vector<4x256xf32>
    %cst_35 = arith.constant 0.000000e+00 : f32
    %63 = vector.shape_cast %25 : vector<1x256xi1> to vector<1x256xi1>
    %64 = vector.broadcast %63 : vector<1x256xi1> to vector<4x256xi1>
    %65 = vector.broadcast %cst_35 : f32 to vector<4x256xf32>
    %66 = arith.select %64, %62, %65 : vector<4x256xi1>, vector<4x256xf32>
    %c32_36 = arith.constant 32 : index
    %c0_37 = arith.constant 0 : index
    %67 = vector.load %arg7[%c32_36, %c0_37] : memref<36x256xf32, #tpu.memory_space<vmem>>, vector<4x256xf32>
    tpu.vector_store %arg7[%c32_36, %c0_37], %66 {strides = array<i32>} : memref<36x256xf32, #tpu.memory_space<vmem>>, vector<4x256xf32>,
    %c0_38 = arith.constant 0 : index
    %c0_39 = arith.constant 0 : index
    %68 = vector.load %arg2[%c0_38, %c0_39] : memref<8x36xbf16, #tpu.memory_space<vmem>>, vector<8x36xbf16>
    %c0_40 = arith.constant 0 : index
    %c0_41 = arith.constant 0 : index
    %69 = vector.load %arg7[%c0_40, %c0_41] : memref<36x256xf32, #tpu.memory_space<vmem>>, vector<36x256xf32>
    %70 = arith.truncf %69 : vector<36x256xf32> to vector<36x256xbf16>
    %cst_42 = arith.constant dense<0.000000e+00> : vector<8x256xf32>
    %71 = tpu.matmul %68, %70, %cst_42 {dimension_numbers = #tpu.dot_dimension_numbers<[1], [0], [0], [1], [0, 0, 1, 1], [], []>} : vector<8x36xbf16>, vector<36x256xbf16>, vector<8x256xf32> -> vector<8x256xf32>
    %c0_43 = arith.constant 0 : index
    %c0_44 = arith.constant 0 : index
    %72 = vector.load %arg3[%c0_43, %c0_44] : memref<8x1xf32, #tpu.memory_space<vmem>>, vector<8x1xf32>
    %73 = vector.broadcast %72 : vector<8x1xf32> to vector<8x256xf32>
    %74 = arith.addf %71, %73 : vector<8x256xf32>
    %c0_45 = arith.constant 0 : index
    %c0_46 = arith.constant 0 : index
    %75 = vector.load %arg4[%c0_45, %c0_46] : memref<8x1xf32, #tpu.memory_space<vmem>>, vector<8x1xf32>
    %cst_47 = arith.constant 0.000000e+00 : f32
    %76 = vector.broadcast %cst_47 : f32 to vector<8x256xf32>
    %77 = arith.cmpf ogt, %74, %76 : vector<8x256xf32>
    %78 = vector.broadcast %75 : vector<8x1xf32> to vector<8x256xf32>
    %79 = arith.mulf %78, %74 : vector<8x256xf32>
    %80 = arith.select %77, %74, %79 : vector<8x256xi1>, vector<8x256xf32>
    %c0_48 = arith.constant 0 : index
    %c0_49 = arith.constant 0 : index
    %c0_50 = arith.constant 0 : index
    %81 = vector.load %arg5[%c0_48, %c0_49, %c0_50] : memref<1x8x256xf32, #tpu.memory_space<vmem>>, vector<1x8x256xf32>
    %82 = vector.shape_cast %81 : vector<1x8x256xf32> to vector<8x256xf32>
    %83 = vector.shape_cast %80 : vector<8x256xf32> to vector<1x8x256xf32>
    tpu.vector_store %arg5[%c0_48, %c0_49, %c0_50], %83 {strides = array<i32>} : memref<1x8x256xf32, #tpu.memory_space<vmem>>, vector<1x8x256xf32>,
    return
  }
  func.func @transform_0(%arg0: i32) -> (i32, i32, i32) {
    %c0_i32 = arith.constant 0 : i32
    %c0_i32_0 = arith.constant 0 : i32
    %c0_i32_1 = arith.constant 0 : i32
    return %arg0, %c0_i32, %c0_i32_0 : i32, i32, i32
  }
  func.func @transform_1(%arg0: i32) -> (i32, i32) {
    %c0_i32 = arith.constant 0 : i32
    %c0_i32_0 = arith.constant 0 : i32
    %c0_i32_1 = arith.constant 0 : i32
    return %c0_i32, %c0_i32_0 : i32, i32
  }
  func.func @transform_2(%arg0: i32) -> (i32, i32) {
    %c0_i32 = arith.constant 0 : i32
    %c0_i32_0 = arith.constant 0 : i32
    %c0_i32_1 = arith.constant 0 : i32
    return %c0_i32, %c0_i32_0 : i32, i32
  }
  func.func @transform_3(%arg0: i32) -> (i32, i32) {
    %c0_i32 = arith.constant 0 : i32
    %c0_i32_0 = arith.constant 0 : i32
    %c0_i32_1 = arith.constant 0 : i32
    return %c0_i32, %c0_i32_0 : i32, i32
  }
  func.func @transform_4(%arg0: i32) -> (i32, i32, i32) {
    %c0_i32 = arith.constant 0 : i32
    %c0_i32_0 = arith.constant 0 : i32
    %c0_i32_1 = arith.constant 0 : i32
    return %arg0, %c0_i32, %c0_i32_0 : i32, i32, i32
  }
}

</mosaic_0001>

<llo_original>
// kernel: tpu_custom_call.1
$region0: #{tpu_custom_call.1}
  #allocation0 [shape = 'u32[]', space=smem, size = 0x4, offset = 0x4, fixed_abs, tag = 'smem constant byte address 0x4 - core index']
  #allocation1 [shape = 'u32[72,128]{1,0:T(1,128)}', space=vmem, size = 0x9000, scoped, tag = 'internal scratch']
  #allocation2 [shape = 'f32[4,290]{1,0:T(4,128)}', space=vmem, size = 0x1800, scoped, tag = 'scratch operand']
  #allocation3 [shape = 'f32[36,256]{1,0:T(8,128)}', space=vmem, size = 0xa000, scoped, tag = 'scratch operand']
  %s0 = inlined_call_operand.vmem [shape: f32[2,4,256], index: 0, kind: input, shape index: {}]
  %s1 = inlined_call_operand.hbm [shape: bf16[8,36], index: 1, kind: input, shape index: {}]
  %s2 = inlined_call_operand.vmem [shape: f32[8,1], index: 2, kind: input, shape index: {}]
  %s3 = inlined_call_operand.vmem [shape: f32[8,1], index: 3, kind: input, shape index: {}]
  %s4 = inlined_call_operand.hbm [shape: f32[2,8,256], index: 4, kind: output, shape index: {}]
  %s5 = sld [smem:[#allocation0]]
  $region53: #{tpu_custom_call.1} parent=0
    _
  %s7 = ssub.s32 1, %s5
  %s8 = scalar_select 0, %s7, %s5
  $region1: #{tpu_custom_call.1} parent=0
    #allocation4 [shape = 'u8[2048]{0}', space=vmem, size = 0x800, scoped, tag = 'input window, operand 1, single buffered']
    #allocation5 [shape = 's32[2]{0}', space=sflag, size = 0x8, scoped, tag = 'scoped memory for tpu_custom_call.1']
    #allocation6 [shape = 's32[2]{0}', space=sflag, size = 0x8, scoped, tag = 'scoped memory for tpu_custom_call.1']
    #allocation7 [shape = 'u8[16384]{0}', space=vmem, size = 0x4000, scoped, tag = 'output window, operand 0']
    %9 = vsyncpa [#allocation5], 0
    %10 = vsyncpa [#allocation6], 0
    %s11 = scalar_lea.sflag [#allocation6], 1
    %12 = vsyncpa %s11, 0
    loop: start=0, step=1, limit=4
    $region2: #{tpu_custom_call.1} parent=1 // loop_pre_header
      _
    $region3: #{tpu_custom_call.1} parent=1 // loop_header
      %s14 = sphi 0, %s18
      %p15 = scmp.ge.s32.totalorder %s14, 4
      %s24 = sphi 0, %s26
      %s27 = sphi 0, %s24
      %s28 = sphi 0, %s27
      %s44 = sphi 0, %s28
      %s48 = sphi 0, %s48
      %s50 = sphi 0, %s48
      %s51 = sphi 0, %s50
      %s65 = sphi 0, %s51
      %s69 = sphi 0, %s69
      %s71 = sphi 0, %s69
      %s72 = sphi 0, %s71
      %s86 = sphi 0, %s72
      %s90 = sphi 0, %s90
      %s92 = sphi 0, %s90
      %s93 = sphi 0, %s92
      %s107 = sphi 0, %s93
      %s113 = sphi 0, %s115
      %s116 = sphi 0, %s113
      %s117 = sphi 0, %s116
      %s133 = sphi 0, %s117
    $region4: #{tpu_custom_call.1} parent=1 // loop_header_branch
      %17 = sbr.rel (%p15) target = $region8
    $region5: #{tpu_custom_call.1} parent=1 // loop_body
      %s19 = ssub.s32 %s14, 1
      %s20 = ssub.s32 %s14, 2
      %s21 = sadd.s32 %s14, 1
      %s22 = ssub.s32 %s14, %s21
      %p23 = scmp.eq.s32.totalorder %s22, 0
      %s25 = sadd.s32 %s24, 1
      %s26 = scalar_select %p23, %s24, %s25
      %p29 = pneg %p23
      %p30 = scmp.eq.s32.totalorder %s14, 1
      %p31 = por %p29, %p30
      %p32 = scmp.ne.s32.totalorder %s24, %s27
      %p33 = scmp.eq.s32.totalorder %s14, 0
      %p34 = por %p32, %p33
      %p35 = scmp.ne.s32.totalorder %s24, %s27
      %p36 = scmp.eq.s32.totalorder %s19, 1
      %p37 = por %p35, %p36
      %p38 = scmp.ne.s32.totalorder %s27, %s28
      %p39 = scmp.eq.s32.totalorder %s19, 0
      %p40 = por %p38, %p39
      %p41 = scmp.ne.s32.totalorder %s27, %s28
      %p42 = scmp.eq.s32.totalorder %s20, 1
      %p43 = por %p41, %p42
      %p45 = scmp.ne.s32.totalorder %s28, %s44
      %p46 = scmp.eq.s32.totalorder %s20, 0
      %p47 = por %p45, %p46
      %s49 = sadd.s32 %s48, 1
      %p52 = scmp.eq.s32.totalorder %s14, 1
      %p53 = scmp.ne.s32.totalorder %s48, %s50
      %p54 = scmp.eq.s32.totalorder %s14, 0
      %p55 = por %p53, %p54
      %p56 = scmp.ne.s32.totalorder %s48, %s50
      %p57 = scmp.eq.s32.totalorder %s19, 1
      %p58 = por %p56, %p57
      %p59 = scmp.ne.s32.totalorder %s50, %s51
      %p60 = scmp.eq.s32.totalorder %s19, 0
      %p61 = por %p59, %p60
      %p62 = scmp.ne.s32.totalorder %s50, %s51
      %p63 = scmp.eq.s32.totalorder %s20, 1
      %p64 = por %p62, %p63
      %p66 = scmp.ne.s32.totalorder %s51, %s65
      %p67 = scmp.eq.s32.totalorder %s20, 0
      %p68 = por %p66, %p67
      %s70 = sadd.s32 %s69, 1
      %p73 = scmp.eq.s32.totalorder %s14, 1
      %p74 = scmp.ne.s32.totalorder %s69, %s71
      %p75 = scmp.eq.s32.totalorder %s14, 0
      %p76 = por %p74, %p75
      %p77 = scmp.ne.s32.totalorder %s69, %s71
      %p78 = scmp.eq.s32.totalorder %s19, 1
      %p79 = por %p77, %p78
      %p80 = scmp.ne.s32.totalorder %s71, %s72
      %p81 = scmp.eq.s32.totalorder %s19, 0
      %p82 = por %p80, %p81
      %p83 = scmp.ne.s32.totalorder %s71, %s72
      %p84 = scmp.eq.s32.totalorder %s20, 1
      %p85 = por %p83, %p84
      %p87 = scmp.ne.s32.totalorder %s72, %s86
      %p88 = scmp.eq.s32.totalorder %s20, 0
      %p89 = por %p87, %p88
      %s91 = sadd.s32 %s90, 1
      %p94 = scmp.eq.s32.totalorder %s14, 1
      %p95 = scmp.ne.s32.totalorder %s90, %s92
      %p96 = scmp.eq.s32.totalorder %s14, 0
      %p97 = por %p95, %p96
      %p98 = scmp.ne.s32.totalorder %s90, %s92
      %p99 = scmp.eq.s32.totalorder %s19, 1
      %p100 = por %p98, %p99
      %p101 = scmp.ne.s32.totalorder %s92, %s93
      %p102 = scmp.eq.s32.totalorder %s19, 0
      %p103 = por %p101, %p102
      %p104 = scmp.ne.s32.totalorder %s92, %s93
      %p105 = scmp.eq.s32.totalorder %s20, 1
      %p106 = por %p104, %p105
      %p108 = scmp.ne.s32.totalorder %s93, %s107
      %p109 = scmp.eq.s32.totalorder %s20, 0
      %p110 = por %p108, %p109
      %s111 = ssub.s32 %s14, %s21
      %p112 = scmp.eq.s32.totalorder %s111, 0
      %s114 = sadd.s32 %s113, 1
      %s115 = scalar_select %p112, %s113, %s114
      %p118 = pneg %p112
      %p119 = scmp.eq.s32.totalorder %s14, 1
      %p120 = por %p118, %p119
      %p121 = scmp.ne.s32.totalorder %s113, %s116
      %p122 = scmp.eq.s32.totalorder %s14, 0
      %p123 = por %p121, %p122
      %p124 = scmp.ne.s32.totalorder %s113, %s116
      %p125 = scmp.eq.s32.totalorder %s19, 1
      %p126 = por %p124, %p125
      %p127 = scmp.ne.s32.totalorder %s116, %s117
      %p128 = scmp.eq.s32.totalorder %s19, 0
      %p129 = por %p127, %p128
      %p130 = scmp.ne.s32.totalorder %s116, %s117
      %p131 = scmp.eq.s32.totalorder %s20, 1
      %p132 = por %p130, %p131
      %p134 = scmp.ne.s32.totalorder %s117, %s133
      %p135 = scmp.eq.s32.totalorder %s20, 0
      %p136 = por %p134, %p135
      %p137 = scmp.le.s32.totalorder 1, %s14
      %p138 = scmp.lt.s32.totalorder %s14, 3
      %p139 = pnand %p137, %p138
      %p140 = pneg %p139
      // Predicated region
      $region9: #{tpu_custom_call.1} parent=5 // pred_check
        _
      $region10: #{tpu_custom_call.1} parent=5 // pred_check_branch
        %142 = sbr.rel (%p139) target = $region12
      $region11: #{tpu_custom_call.1} parent=5 // pred_region
        %s143 = ssub.s32 %s14, 1
        // Predicated region
        $region13: #{tpu_custom_call.1} parent=11 // pred_check
          %p144 = pneg %p61
        $region14: #{tpu_custom_call.1} parent=11 // pred_check_branch
          %146 = sbr.rel (%p144) target = $region16
        $region15: #{tpu_custom_call.1} parent=11 // pred_region
          %148 = vsyncadd [#allocation5], 0
          %s150 = sshll.u32 %s1, 4
          %s151 = int_to_ptr.hbm [resolvable:$true] %s150
          %s152 = sshll.u32 [#allocation4], 4
          %s153 = int_to_ptr.vmem [resolvable:$true] %s152
          %155 = dma.hbm_to_vmem [thread:$0]  %s151, 64, %s153, [#allocation5]
        $region16: #{tpu_custom_call.1} parent=11 // pred_fallthru
          _
        // Predicated region
        $region17: #{tpu_custom_call.1} parent=11 // pred_check
          %p156 = pneg %p82
        $region18: #{tpu_custom_call.1} parent=11 // pred_check_branch
          %158 = sbr.rel (%p156) target = $region20
        $region19: #{tpu_custom_call.1} parent=11 // pred_region
          _
        $region20: #{tpu_custom_call.1} parent=11 // pred_fallthru
          _
        // Predicated region
        $region21: #{tpu_custom_call.1} parent=11 // pred_check
          %p159 = pneg %p103
        $region22: #{tpu_custom_call.1} parent=11 // pred_check_branch
          %161 = sbr.rel (%p159) target = $region24
        $region23: #{tpu_custom_call.1} parent=11 // pred_region
          _
        $region24: #{tpu_custom_call.1} parent=11 // pred_fallthru
          _
      $region12: #{tpu_custom_call.1} parent=5 // pred_fallthru
        _
      %p162 = scmp.lt.s32.totalorder %s14, 2
      // Predicated region
      $region25: #{tpu_custom_call.1} parent=5 // pred_check
        %p163 = pneg %p162
      $region26: #{tpu_custom_call.1} parent=5 // pred_check_branch
        %165 = sbr.rel (%p163) target = $region28
      $region27: #{tpu_custom_call.1} parent=5 // pred_region
        // Predicated region
        $region29: #{tpu_custom_call.1} parent=27 // pred_check
          %p166 = pneg %p34
        $region30: #{tpu_custom_call.1} parent=27 // pred_check_branch
          %168 = sbr.rel (%p166) target = $region32
        $region31: #{tpu_custom_call.1} parent=27 // pred_region
          %p169 = scmp.lt.s32.totalorder %s14, 1
          %s170 = scalar_select %p169, %s14, 1
          %s171 = smul.addr %s170, 2
          %s172 = smul.addr %s171, 4
          %s173 = scalar_lea.vmem %s0, %s172
        $region32: #{tpu_custom_call.1} parent=27 // pred_fallthru
          _
      $region28: #{tpu_custom_call.1} parent=5 // pred_fallthru
        _
      %p174 = scmp.le.s32.totalorder 1, %s14
      %p175 = scmp.lt.s32.totalorder %s14, 3
      %p176 = pnand %p174, %p175
      %p177 = pneg %p176
      // Predicated region
      $region33: #{tpu_custom_call.1} parent=5 // pred_check
        _
      $region34: #{tpu_custom_call.1} parent=5 // pred_check_branch
        %179 = sbr.rel (%p176) target = $region36
      $region35: #{tpu_custom_call.1} parent=5 // pred_region
        %s180 = ssub.s32 %s14, 1
        // Predicated region
        $region37: #{tpu_custom_call.1} parent=35 // pred_check
          %p181 = pneg %p61
        $region38: #{tpu_custom_call.1} parent=35 // pred_check_branch
          %183 = sbr.rel (%p181) target = $region40
        $region39: #{tpu_custom_call.1} parent=35 // pred_region
          %185 = dma.done [#allocation5], 64
        $region40: #{tpu_custom_call.1} parent=35 // pred_fallthru
          _
        %p186 = scmp.lt.s32.totalorder %s19, 1
        %s187 = scalar_select %p186, %s19, 1
        %s188 = smul.addr %s187, 2
        %s189 = smul.addr %s188, 4
        %s190 = scalar_lea.vmem %s0, %s189
        %p191 = pneg %p40
        %p192 = pneg %p37
        %p193 = pneg %p61
        %p194 = pneg %p58
        %p195 = pneg %p82
        %p196 = pneg %p79
        %p197 = pneg %p103
        %p198 = pneg %p100
        %p199 = pneg %p129
        %p200 = pneg %p126
        %s201 = sand.u32 %s116, 1
        %s202 = scalar_lea.sflag [#allocation6], %s201
        %s203 = sand.u32 %s116, 1
        %s204 = smul.addr %s203, 16
        %s205 = scalar_lea.vmem [#allocation7], %s204
        %p206 = scmp.lt.s32.totalorder %s19, 1
        %s207 = scalar_select %p206, %s19, 1
        %s208 = smul.addr %s207, 2
        %s209 = smul.addr %s208, 4
        %s210 = scalar_lea.vmem %s0, %s209
        %v212 = vld [vmem:[%s210] sm:$0xff]
        %213 = vst [vmem:[#allocation2] sm:$0xff] 0.0
        %vm214 = vcmask 273408
        %215 = vst.msk [vmem:[#allocation2 + $0x8] sm:$0xf] %vm214, 0.0
        %217 = vrot.lane.b32.xlu0 %v212, 17
        %v218 = vpop.permute.xlu0 %217
        %v219 = vrot.slane %v218, 4
        %vm220 = vcmask 138240
        %v221 = vsel %vm220, %v219, %v218
        %vm224 = vcmask 1043592
        %vm225 = vcmask 1047556
        %vm226 = vmor %vm225, %vm224
        %227 = vst.msk [vmem:[#allocation2] sm:$0xff] %vm226, %v221
        %vm228 = vcmask 134144
        %229 = vst.msk [vmem:[#allocation2 + $0x8] sm:$0xf] %vm228, %v219
        %v230 = vlaneseq
        %v231 = vand.u32 %v230, 127
        %v232 = vadd.s32 %v231, 128
        %vm233 = vcmp.lt.s32.totalorder %v231, 0
        %v234 = vsub.s32 0, %v231
        %v235 = vsel %vm233, %v234, %v231
        %v236 = vshrl.u32 %v235, 4
        %v237 = vand.u32 %v235, 15
        %v238 = vsub.s32 0, %v237
        %v239 = vsel %vm233, %v238, %v237
        %vm240 = vcmp.lt.s32.totalorder %v232, 0
        %v241 = vsub.s32 0, %v232
        %v242 = vsel %vm240, %v241, %v232
        %v243 = vshrl.u32 %v242, 4
        %v244 = vand.u32 %v242, 15
        %v245 = vsub.s32 0, %v244
        %v246 = vsel %vm240, %v245, %v244
        %vm247 = vcmp.ne.s32.totalorder %v239, 0
        %vm248 = vcmp.ne.s32.totalorder %v246, 0
        %vm249 = vcmp.lt.s32.totalorder %v239, 0
        %vm250 = vcmp.lt.s32.totalorder %v246, 0
        %vm251 = vmand %vm249, %vm247
        %vm252 = vmand %vm250, %vm248
        %v253 = vadd.s32 %v239, 16
        %v254 = vadd.s32 %v246, 16
        %v255 = vsel %vm251, %v253, %v239
        %v256 = vsel %vm252, %v254, %v246
        %vm257 = vcmp.ge.s32.totalorder %v255, 1
        %vm258 = vcmp.ge.s32.totalorder %v256, 1
        %vm259 = vcmp.le.s32.totalorder %v255, 14
        %vm260 = vcmp.le.s32.totalorder %v256, 14
        %v261 = vld [vmem:[#allocation2] sm:$0xff]
        %v262 = vsel %vm257, 1, 0
        %v263 = vsel %vm258, 1, 0
        %vm264 = vcmp.eq.s32.totalorder %v262, 1
        %vm265 = vcmp.eq.s32.totalorder %v263, 1
        %267 = vst [vmem:[#allocation1] ss:$2 sm:$0xff] %v261
        %v268 = vld.sshfl [vmem:[#allocation1] sm:$0xff pattern:$0x75316420]
        %v269 = vld.sshfl [vmem:[#allocation1 + $0x8] sm:$0xff pattern:$0x75316420]
        %v272 = vsel %vm264, %v268, 0.0
        %v273 = vsel %vm265, %v269, 0.0
        %274 = vst [vmem:[#allocation3] sm:$0xf] %v272
        %275 = vst [vmem:[#allocation3 + $0x8] sm:$0xf] %v273
        %v276 = vld [vmem:[#allocation2] sm:$0xff]
        %v277 = vld [vmem:[#allocation2 + $0x8] sm:$0xf]
        %s280 = scalar_lea.vmem [#allocation1], 1
        %281 = vst [vmem:[%s280] ss:$2 sm:$0xff] %v276
        %s282 = scalar_lea.vmem [#allocation1], 17
        %283 = vst [vmem:[%s282] ss:$2 sm:$0xff] %v277
        %v284 = vld.sshfl [vmem:[#allocation1] sm:$0xff pattern:$0x75316420]
        %v285 = vld.sshfl [vmem:[#allocation1 + $0x8] sm:$0xff pattern:$0x75316420]
        %v286 = vld.sshfl [vmem:[#allocation1 + $0x10] sm:$0xff pattern:$0x75316420]
        %287 = vrot.lane.b32.xlu0 %v284, 127
        %v288 = vpop.permute.xlu0 %287
        %289 = vrot.lane.b32.xlu0 %v285, 127
        %v290 = vpop.permute.xlu0 %289
        %291 = vrot.lane.b32.xlu0 %v286, 127
        %v292 = vpop.permute.xlu0 %291
        %vm293 = vcmask 1039360
        %v294 = vsel %vm293, %v288, %v290
        %v295 = vsel %vm293, %v290, %v292
        %298 = vst [vmem:[#allocation3] sm:$0xf0] %v294
        %299 = vst [vmem:[#allocation3 + $0x8] sm:$0xf0] %v295
        %v300 = vld [vmem:[#allocation2] sm:$0xff]
        %v301 = vld [vmem:[#allocation2 + $0x8] sm:$0xf]
        %v302 = vsel %vm259, 1, 0
        %v303 = vsel %vm260, 1, 0
        %vm304 = vcmp.eq.s32.totalorder %v302, 1
        %vm305 = vcmp.eq.s32.totalorder %v303, 1
        %308 = vst [vmem:[#allocation1] ss:$2 sm:$0xff] %v300
        %s309 = scalar_lea.vmem [#allocation1], 16
        %310 = vst [vmem:[%s309] ss:$2 sm:$0xff] %v301
        %v311 = vld.sshfl [vmem:[#allocation1] sm:$0xff pattern:$0x75316420]
        %v312 = vld.sshfl [vmem:[#allocation1 + $0x8] sm:$0xff pattern:$0x75316420]
        %v313 = vld.sshfl [vmem:[#allocation1 + $0x10] sm:$0xff pattern:$0x75316420]
        %314 = vrot.lane.b32.xlu0 %v311, 126
        %v315 = vpop.permute.xlu0 %314
        %316 = vrot.lane.b32.xlu0 %v312, 126
        %v317 = vpop.permute.xlu0 %316
        %318 = vrot.lane.b32.xlu0 %v313, 126
        %v319 = vpop.permute.xlu0 %318
        %vm320 = vcmask 1031168
        %v321 = vsel %vm320, %v315, %v317
        %v322 = vsel %vm320, %v317, %v319
        %v325 = vsel %vm304, %v321, 0.0
        %v326 = vsel %vm305, %v322, 0.0
        %327 = vst [vmem:[#allocation3 + $0x10] sm:$0xf] %v325
        %328 = vst [vmem:[#allocation3 + $0x18] sm:$0xf] %v326
        %v329 = vld [vmem:[#allocation2] sm:$0xff]
        %v330 = vld [vmem:[#allocation2 + $0x8] sm:$0xf]
        %333 = vst [vmem:[#allocation1] ss:$2 sm:$0xff] %v329
        %s334 = scalar_lea.vmem [#allocation1], 16
        %335 = vst [vmem:[%s334] ss:$2 sm:$0xff] %v330
        %v336 = vld.sshfl [vmem:[#allocation1] sm:$0xff pattern:$0x75316420]
        %v337 = vld.sshfl [vmem:[#allocation1 + $0x8] sm:$0xff pattern:$0x75316420]
        %v338 = vld.sshfl [vmem:[#allocation1 + $0x10] sm:$0xff pattern:$0x75316420]
        %339 = vrot.lane.b32.xlu0 %v336, 112
        %v340 = vpop.permute.xlu0 %339
        %341 = vrot.lane.b32.xlu0 %v337, 112
        %v342 = vpop.permute.xlu0 %341
        %343 = vrot.lane.b32.xlu0 %v338, 112
        %v344 = vpop.permute.xlu0 %343
        %vm345 = vcmask 916480
        %v346 = vsel %vm345, %v340, %v342
        %v347 = vsel %vm345, %v342, %v344
        %v350 = vsel %vm264, %v346, 0.0
        %v351 = vsel %vm265, %v347, 0.0
        %v354 = vrot.slane %v350, 4
        %v355 = vrot.slane %v351, 4
        %358 = vst [vmem:[#allocation3 + $0x10] sm:$0xf0] %v354
        %359 = vst [vmem:[#allocation3 + $0x18] sm:$0xf0] %v355
        %v360 = vld [vmem:[#allocation2] sm:$0xff]
        %v361 = vld [vmem:[#allocation2 + $0x8] sm:$0xf]
        %364 = vst [vmem:[#allocation1] ss:$2 sm:$0xff] %v360
        %s365 = scalar_lea.vmem [#allocation1], 16
        %366 = vst [vmem:[%s365] ss:$2 sm:$0xff] %v361
        %v367 = vld.sshfl [vmem:[#allocation1] sm:$0xff pattern:$0x75316420]
        %v368 = vld.sshfl [vmem:[#allocation1 + $0x8] sm:$0xff pattern:$0x75316420]
        %v369 = vld.sshfl [vmem:[#allocation1 + $0x10] sm:$0xff pattern:$0x75316420]
        %370 = vrot.lane.b32.xlu0 %v367, 111
        %v371 = vpop.permute.xlu0 %370
        %372 = vrot.lane.b32.xlu0 %v368, 111
        %v373 = vpop.permute.xlu0 %372
        %374 = vrot.lane.b32.xlu0 %v369, 111
        %v375 = vpop.permute.xlu0 %374
        %vm376 = vcmask 908288
        %v377 = vsel %vm376, %v371, %v373
        %v378 = vsel %vm376, %v373, %v375
        %381 = vst [vmem:[#allocation3 + $0x20] sm:$0xf] %v377
        %382 = vst [vmem:[#allocation3 + $0x28] sm:$0xf] %v378
        %v383 = vld [vmem:[#allocation2] sm:$0xff]
        %v384 = vld [vmem:[#allocation2 + $0x8] sm:$0xf]
        %387 = vst [vmem:[#allocation1] ss:$2 sm:$0xff] %v383
        %s388 = scalar_lea.vmem [#allocation1], 16
        %389 = vst [vmem:[%s388] ss:$2 sm:$0xff] %v384
        %v390 = vld.sshfl [vmem:[#allocation1] sm:$0xff pattern:$0x75316420]
        %v391 = vld.sshfl [vmem:[#allocation1 + $0x8] sm:$0xff pattern:$0x75316420]
        %v392 = vld.sshfl [vmem:[#allocation1 + $0x10] sm:$0xff pattern:$0x75316420]
        %393 = vrot.lane.b32.xlu0 %v390, 110
        %v394 = vpop.permute.xlu0 %393
        %395 = vrot.lane.b32.xlu0 %v391, 110
        %v396 = vpop.permute.xlu0 %395
        %397 = vrot.lane.b32.xlu0 %v392, 110
        %v398 = vpop.permute.xlu0 %397
        %vm399 = vcmask 900096
        %v400 = vsel %vm399, %v394, %v396
        %v401 = vsel %vm399, %v396, %v398
        %v404 = vsel %vm304, %v400, 0.0
        %v405 = vsel %vm305, %v401, 0.0
        %v408 = vrot.slane %v404, 4
        %v409 = vrot.slane %v405, 4
        %412 = vst [vmem:[#allocation3 + $0x20] sm:$0xf0] %v408
        %413 = vst [vmem:[#allocation3 + $0x28] sm:$0xf0] %v409
        %v414 = vld [vmem:[#allocation2] sm:$0xff]
        %v415 = vld [vmem:[#allocation2 + $0x8] sm:$0xf]
        %418 = vst [vmem:[#allocation1] ss:$2 sm:$0xff] %v414
        %s419 = scalar_lea.vmem [#allocation1], 16
        %420 = vst [vmem:[%s419] ss:$2 sm:$0xff] %v415
        %v421 = vld.sshfl [vmem:[#allocation1] sm:$0xff pattern:$0x75316420]
        %v422 = vld.sshfl [vmem:[#allocation1 + $0x8] sm:$0xff pattern:$0x75316420]
        %v423 = vld.sshfl [vmem:[#allocation1 + $0x10] sm:$0xff pattern:$0x75316420]
        %424 = vrot.lane.b32.xlu0 %v421, 96
        %v425 = vpop.permute.xlu0 %424
        %426 = vrot.lane.b32.xlu0 %v422, 96
        %v427 = vpop.permute.xlu0 %426
        %428 = vrot.lane.b32.xlu0 %v423, 96
        %v429 = vpop.permute.xlu0 %428
        %vm430 = vcmask 785408
        %v431 = vsel %vm430, %v425, %v427
        %v432 = vsel %vm430, %v427, %v429
        %v435 = vsel %vm264, %v431, 0.0
        %v436 = vsel %vm265, %v432, 0.0
        %437 = vst [vmem:[#allocation3 + $0x30] sm:$0xf] %v435
        %438 = vst [vmem:[#allocation3 + $0x38] sm:$0xf] %v436
        %v439 = vld [vmem:[#allocation2] sm:$0xff]
        %v440 = vld [vmem:[#allocation2 + $0x8] sm:$0xf]
        %s443 = scalar_lea.vmem [#allocation1], 1
        %444 = vst [vmem:[%s443] ss:$2 sm:$0xff] %v439
        %s445 = scalar_lea.vmem [#allocation1], 17
        %446 = vst [vmem:[%s445] ss:$2 sm:$0xff] %v440
        %v447 = vld.sshfl [vmem:[#allocation1] sm:$0xff pattern:$0x75316420]
        %v448 = vld.sshfl [vmem:[#allocation1 + $0x8] sm:$0xff pattern:$0x75316420]
        %v449 = vld.sshfl [vmem:[#allocation1 + $0x10] sm:$0xff pattern:$0x75316420]
        %450 = vrot.lane.b32.xlu0 %v447, 95
        %v451 = vpop.permute.xlu0 %450
        %452 = vrot.lane.b32.xlu0 %v448, 95
        %v453 = vpop.permute.xlu0 %452
        %454 = vrot.lane.b32.xlu0 %v449, 95
        %v455 = vpop.permute.xlu0 %454
        %vm456 = vcmask 777216
        %v457 = vsel %vm456, %v451, %v453
        %v458 = vsel %vm456, %v453, %v455
        %461 = vst [vmem:[#allocation3 + $0x30] sm:$0xf0] %v457
        %462 = vst [vmem:[#allocation3 + $0x38] sm:$0xf0] %v458
        %v463 = vld [vmem:[#allocation2] sm:$0xff]
        %v464 = vld [vmem:[#allocation2 + $0x8] sm:$0xf]
        %467 = vst [vmem:[#allocation1] ss:$2 sm:$0xff] %v463
        %s468 = scalar_lea.vmem [#allocation1], 16
        %469 = vst [vmem:[%s468] ss:$2 sm:$0xff] %v464
        %v470 = vld.sshfl [vmem:[#allocation1] sm:$0xff pattern:$0x75316420]
        %v471 = vld.sshfl [vmem:[#allocation1 + $0x8] sm:$0xff pattern:$0x75316420]
        %v472 = vld.sshfl [vmem:[#allocation1 + $0x10] sm:$0xff pattern:$0x75316420]
        %473 = vrot.lane.b32.xlu0 %v470, 94
        %v474 = vpop.permute.xlu0 %473
        %475 = vrot.lane.b32.xlu0 %v471, 94
        %v476 = vpop.permute.xlu0 %475
        %477 = vrot.lane.b32.xlu0 %v472, 94
        %v478 = vpop.permute.xlu0 %477
        %vm479 = vcmask 769024
        %v480 = vsel %vm479, %v474, %v476
        %v481 = vsel %vm479, %v476, %v478
        %v484 = vsel %vm304, %v480, 0.0
        %v485 = vsel %vm305, %v481, 0.0
        %486 = vst [vmem:[#allocation3 + $0x40] sm:$0xf] %v484
        %487 = vst [vmem:[#allocation3 + $0x48] sm:$0xf] %v485
        %v488 = vld [vmem:[#allocation4] sm:$0xf]
        %v489 = vld [vmem:[#allocation3] sm:$0xff]
        %v490 = vld [vmem:[#allocation3 + $0x8] sm:$0xff]
        %v491 = vld [vmem:[#allocation3 + $0x10] sm:$0xff]
        %v492 = vld [vmem:[#allocation3 + $0x18] sm:$0xff]
        %v493 = vld [vmem:[#allocation3 + $0x20] sm:$0xff]
        %v494 = vld [vmem:[#allocation3 + $0x28] sm:$0xff]
        %v495 = vld [vmem:[#allocation3 + $0x30] sm:$0xff]
        %v496 = vld [vmem:[#allocation3 + $0x38] sm:$0xff]
        %v497 = vld [vmem:[#allocation3 + $0x40] sm:$0xf]
        %v498 = vld [vmem:[#allocation3 + $0x48] sm:$0xf]
        %v499 = vpack.c.bf16 %v491, %v489
        %v500 = vpack.c.bf16 %v492, %v490
        %v501 = vpack.c.bf16 %v495, %v493
        %v502 = vpack.c.bf16 %v496, %v494
        %v503 = vpack.c.bf16 %v497, %v497
        %v504 = vpack.c.bf16 %v498, %v498
        %v505 = vld [vmem:[%s2] sm:$0xff]
        %507 = vset.pattern.permute.xlu0 0
        %508 = vperm.xlu0 %507, %v505
        %v509 = vpop.permute.xlu0 %508
        %vm511 = vcmask 293888
        %v513 = vsel %vm511, %v488, 0
        %vm515 = vcmask 1041408
        %v517 = vsel %vm515, %v503, 0
        %v520 = vsel %vm515, %v504, 0
        %522 = vmatpush.bf16.msra.mxu0 0
        %523 = vmatpush.bf16.msra.mxu0 0
        %524 = vmatpush.bf16.msra.mxu0 0
        %525 = vmatpush.bf16.msra.mxu0 0
        %526 = vmatpush.bf16.msra.mxu0 0
        %527 = vmatpush.bf16.msra.mxu0 %v517
        %528 = vmatpush.bf16.msra.mxu0 %v501
        %529 = vmatpush.bf16.msra.mxu0 %v499
        %530 = vmatmul.bf16.gmra.mxu0 %v513
        %v531 = vpop.f32.mrf.mxu0
        %v532 = vadd.f32 %v509, %v531
        %v533 = vpop.f32.mrf.mxu0
        %534 = vdwg.mxu0
        %535 = vmatpush.bf16.msra.mxu0 0
        %536 = vmatpush.bf16.msra.mxu0 0
        %537 = vmatpush.bf16.msra.mxu0 0
        %538 = vmatpush.bf16.msra.mxu0 0
        %539 = vmatpush.bf16.msra.mxu0 0
        %540 = vmatpush.bf16.msra.mxu0 %v520
        %541 = vmatpush.bf16.msra.mxu0 %v502
        %542 = vmatpush.bf16.msra.mxu0 %v500
        %543 = vmatmul.bf16.gmra.mxu0 %v513
        %v544 = vpop.f32.mrf.mxu0
        %v545 = vadd.f32 %v509, %v544
        %v546 = vpop.f32.mrf.mxu0
        %547 = vdwg.mxu0
        %v548 = vld [vmem:[%s3] sm:$0xff]
        %vm549 = vcmp.gt.f32.partialorder %v532, 0.0
        %vm550 = vcmp.gt.f32.partialorder %v545, 0.0
        %552 = vset.pattern.permute.xlu0 0
        %553 = vperm.xlu0 %552, %v548
        %v554 = vpop.permute.xlu0 %553
        %v556 = vmul.f32 %v554, %v532
        %v557 = vmul.f32 %v554, %v545
        %v558 = vsel %vm549, %v532, %v556
        %v559 = vsel %vm550, %v545, %v557
        %560 = vst [vmem:[%s205] sm:$0xff] %v558
        %561 = vst [vmem:[%s205 + $0x8] sm:$0xff] %v559
        %s562 = sand.u32 %s116, 1
        %s563 = scalar_lea.sflag [#allocation6], %s562
        %s564 = sand.u32 %s116, 1
        %s565 = smul.addr %s564, 16
        %s566 = scalar_lea.vmem [#allocation7], %s565
        // Predicated region
        $region41: #{tpu_custom_call.1} parent=35 // pred_check
          %p567 = pneg %p126
        $region42: #{tpu_custom_call.1} parent=35 // pred_check_branch
          %569 = sbr.rel (%p567) target = $region44
        $region43: #{tpu_custom_call.1} parent=35 // pred_region
          %571 = vsyncadd %s563, 0
          %s572 = smul.addr %s19, 2
          %s573 = smul.addr %s572, 8
          %s574 = scalar_lea.hbm %s4, %s573
          %s576 = sshll.u32 %s566, 4
          %s577 = int_to_ptr.vmem [resolvable:$true] %s576
          %s578 = sshll.u32 %s574, 4
          %s579 = int_to_ptr.hbm [resolvable:$true] %s578
          %581 = dma.vmem_to_hbm [thread:$0]  %s577, 256, %s579, %s563
        $region44: #{tpu_custom_call.1} parent=35 // pred_fallthru
          _
      $region36: #{tpu_custom_call.1} parent=5 // pred_fallthru
        _
      %p582 = scmp.le.s32.totalorder 2, %s14
      // Predicated region
      $region45: #{tpu_custom_call.1} parent=5 // pred_check
        %p583 = pneg %p582
      $region46: #{tpu_custom_call.1} parent=5 // pred_check_branch
        %585 = sbr.rel (%p583) target = $region48
      $region47: #{tpu_custom_call.1} parent=5 // pred_region
        %s586 = ssub.s32 %s14, 2
        // Predicated region
        $region49: #{tpu_custom_call.1} parent=47 // pred_check
          %p587 = pneg %p132
        $region50: #{tpu_custom_call.1} parent=47 // pred_check_branch
          %589 = sbr.rel (%p587) target = $region52
        $region51: #{tpu_custom_call.1} parent=47 // pred_region
          %s590 = sand.u32 %s117, 1
          %s591 = scalar_lea.sflag [#allocation6], %s590
          %s592 = sand.u32 %s117, 1
          %s593 = smul.addr %s592, 16
          %s594 = scalar_lea.vmem [#allocation7], %s593
          %596 = dma.done %s591, 256
        $region52: #{tpu_custom_call.1} parent=47 // pred_fallthru
          _
      $region48: #{tpu_custom_call.1} parent=5 // pred_fallthru
        _
    $region6: #{tpu_custom_call.1} parent=1 // loop_footer
      %s18 = sadd.s32 1, %s14
    $region7: #{tpu_custom_call.1} parent=1 // loop_footer_branch
      %13 = sbr.rel target = $region3
    $region8: #{tpu_custom_call.1} parent=1 // loop_exit
      _
    %597 = vsyncpa [#allocation5], 1
    %s598 = scalar_lea.sflag [#allocation5], 1
    %599 = vsyncpa %s598, 1
    %600 = vsyncpa [#allocation6], 1
    %s601 = scalar_lea.sflag [#allocation6], 1
    %602 = vsyncpa %s601, 1

</llo_original>
